<compile_context>
chip_gen: v7x
topology: tpu7x:2x2x1
jax: 0.10.0
libtpu: 0.0.40
codegen_flags: <defaults>
</compile_context>

<pallas_src>
import jax
import jax.numpy as jnp
import numpy as np
from jax import lax
from jax.experimental import pallas as pl
from jax.experimental.pallas import tpu as pltpu

TEMPERATURE = 0.5  # deterministic "parameter" from __init__


def _round_up(x, m):
    return (x + m - 1) // m * m


def _vmem_capacity_bytes():
    try:
        return int(pltpu.get_tpu_info().vmem_capacity_bytes)
    except Exception:
        return 64 << 20  # conservative (v7x-sized) fallback


def _make_kernel(tm, inv_t, precision):
    NEG_BIG = -1e30  # Python float -> inlined literal, NOT a captured jnp const

    def kernel(a_ref, p_ref, ct_ref, o_ref):
        row_start = pl.program_id(0) * tm

        a = a_ref[...]                                    # [tm, dim] (MXU dtype)
        af = a.astype(jnp.float32) * inv_t                # fold 1/T on the small tile

        # Positive logit <a_i, view1_i> / T via [tm, dim] elementwise + lane reduce.
        pos = jnp.sum(af * p_ref[...].astype(jnp.float32), axis=1, keepdims=True)

        # Fused similarities against the resident, pre-transposed contrast set.
        # Native [M,K]x[K,N] MXU form, f32 accumulation.
        s = lax.dot_general(af.astype(a.dtype), ct_ref[...],
                            (((1,), (0,)), ((), ())),
                            preferred_element_type=jnp.float32,
                            precision=precision)          # [tm, 2b] f32

        # Mask the self-pair (anchor i vs contrast column i) before the row max.
        two_b = s.shape[1]
        col = lax.broadcasted_iota(jnp.int32, (tm, two_b), 1)
        row = lax.broadcasted_iota(jnp.int32, (tm, two_b), 0) + row_start
        s = jnp.where(col == row, NEG_BIG, s)

        m = jnp.max(s, axis=1, keepdims=True)
        denom = jnp.sum(jnp.exp(s - m), axis=1, keepdims=True)
        o_ref[...] = -(pos - m - jnp.log(denom))          # [tm, 1] per-row loss

    return kernel


def simclr_loss(features, temperature=TEMPERATURE, tm=None, mxu_dtype=None):
    """features: [b, 2, dim] -> scalar SimCLR loss (float32)."""
    b, n, dim = features.shape
    assert n == 2
    view0 = features[:, 0, :]          # anchors == first half of the contrast set
    view1 = features[:, 1, :]          # positives == second half

    if mxu_dtype is None:
        # bf16 MXU operands for f32 inputs (softmax math stays f32); pass
        # mxu_dtype=jnp.float32 for reference-grade numerics.
        mxu_dtype = jnp.bfloat16 if features.dtype == jnp.float32 else features.dtype
    mxu_dtype = np.dtype(mxu_dtype)
    itemsize = mxu_dtype.itemsize
    sub = 8 if itemsize >= 4 else (16 if itemsize == 2 else 32)  # sublane multiple

    vmem_cap = _vmem_capacity_bytes()
    tile_cap = 512 if vmem_cap >= (100 << 20) else 256           # v5e/v6e vs v7x

    if tm is None:
        bp = _round_up(b, sub)
        if bp <= tile_cap:
            tm = bp                                 # single grid step
        else:
            tm = None
            for cand in range(tile_cap, sub - 1, -sub):  # largest divisor of bp
                if bp % cand == 0:
                    tm = cand
                    break
            if tm is None:
                tm = tile_cap
                bp = _round_up(b, tm)
    else:
        tm = _round_up(tm, sub)
        bp = _round_up(b, tm)

    anchor = view0.astype(mxu_dtype)
    positive = view1.astype(mxu_dtype)
    # Contrast built once, pre-transposed to MXU-native [K, N] = [dim, 2b].
    # NOT padded along the contrast axis -> no pad-column masking in-kernel.
    contrast_t = jnp.concatenate([view0, view1], axis=0).astype(mxu_dtype).T

    if bp != b:
        pad = ((0, bp - b), (0, 0))
        anchor = jnp.pad(anchor, pad)
        positive = jnp.pad(positive, pad)

    two_b = 2 * b
    est = (2 * dim * two_b * itemsize          # resident contrast (2 buffers)
           + 2 * 2 * tm * dim * itemsize       # anchor + positive tiles, 2 buffers
           + 2 * tm * 4                        # output tile, 2 buffers
           + 3 * tm * two_b * 4                # f32 logits / exp temporaries
           + (2 << 20))                        # margin
    vmem_limit = int(min(max(est, 16 << 20), int(0.8 * vmem_cap)))

    precision = lax.Precision.HIGHEST if mxu_dtype == np.float32 else None
    kernel = _make_kernel(tm, float(1.0 / temperature), precision)

    out = pl.pallas_call(
        kernel,
        out_shape=jax.ShapeDtypeStruct((bp, 1), jnp.float32),
        grid_spec=pltpu.PrefetchScalarGridSpec(
            num_scalar_prefetch=0,
            grid=(bp // tm,),
            in_specs=[
                pl.BlockSpec((tm, dim), lambda i: (i, 0)),      # anchor tile
                pl.BlockSpec((tm, dim), lambda i: (i, 0)),      # positive tile
                pl.BlockSpec((dim, two_b), lambda i: (0, 0)),   # resident contrast^T
            ],
            out_specs=pl.BlockSpec((tm, 1), lambda i: (i, 0)),
        ),
        compiler_params=pltpu.CompilerParams(
            dimension_semantics=("parallel",),
            vmem_limit_bytes=vmem_limit,
        ),
    )(anchor, positive, contrast_t)
    return jnp.mean(out[:b, 0])


def simclr_loss_ref(features, temperature=TEMPERATURE):
    """Float64 NumPy reference mirroring the PyTorch module."""
    f = np.asarray(features, dtype=np.float64)
    b = f.shape[0]
    anchor = f[:, 0]
    contrast = np.concatenate([f[:, 0], f[:, 1]], axis=0)
    dot = anchor @ contrast.T / temperature
    logits = dot - dot.max(axis=1, keepdims=True)
    eye = np.eye(b)
    mask = np.tile(eye, (1, 2))
    logits_mask = np.concatenate([1.0 - eye, np.ones((b, b))], axis=1)
    mask = mask * logits_mask
    exp_logits = np.exp(logits) * logits_mask
    log_prob = logits - np.log(exp_logits.sum(1, keepdims=True))
    return float(-((mask * log_prob).sum(1) / mask.sum(1)).mean())


if __name__ == "__main__":
    key = jax.random.PRNGKey(0)

    # [b, 2, dim] features, L2-normalized as in SimCLR. Default path uses bf16
    # MXU operands (f32 softmax), so compare with a correspondingly loose tol.
    b, dim = 8, 32
    feats = jax.random.normal(key, (b, 2, dim), dtype=jnp.float32)
    feats = feats / jnp.linalg.norm(feats, axis=-1, keepdims=True)
    loss = jax.block_until_ready(simclr_loss(feats))
    ref = simclr_loss_ref(feats)
    assert np.isfinite(float(loss)), float(loss)
    assert np.allclose(float(loss), ref, rtol=2e-2, atol=2e-2), (float(loss), ref)

    # Multi-tile grid + padded anchor rows (b not a multiple of tm), f32 MXU
    # path; un-normalized features stress the masked-softmax stabilization.
    b2, dim2 = 20, 32
    feats2 = jax.random.normal(jax.random.PRNGKey(1), (b2, 2, dim2),
                               dtype=jnp.float32)
    loss2 = jax.block_until_ready(
        simclr_loss(feats2, tm=8, mxu_dtype=jnp.float32))
    ref2 = simclr_loss_ref(feats2)
    assert np.allclose(float(loss2), ref2, rtol=2e-2, atol=1e-2), (float(loss2), ref2)

    print("KERNEL_OK")
</pallas_src>

<mosaic_0001>
module attributes {stable_mosaic.version = 11 : i64} {
  func.func @kernel(%arg0: i32, %arg1: memref<16x32xbf16, #tpu.memory_space<vmem>>, %arg2: memref<16x32xbf16, #tpu.memory_space<vmem>>, %arg3: memref<32x16xbf16, #tpu.memory_space<vmem>>, %arg4: memref<16x1xf32, #tpu.memory_space<vmem>>) attributes {dimension_semantics = [#tpu.dimension_semantics<parallel>], iteration_bounds = array<i64: 1>, scalar_prefetch = 0 : i64, scratch_operands = 0 : i64, tpu.core_type = #tpu.core_type<tc>, window_params = [{transform_indices = @transform_0, window_bounds = array<i64: 16, 32>}, {transform_indices = @transform_1, window_bounds = array<i64: 16, 32>}, {pipeline_mode = #tpu.pipeline_mode<synchronous>, transform_indices = @transform_2, window_bounds = array<i64: 32, 16>}, {transform_indices = @transform_3, window_bounds = array<i64: 16, 1>}]} {
    %c16_i32 = arith.constant 16 : i32
    %0 = arith.muli %arg0, %c16_i32 : i32
    %c0 = arith.constant 0 : index
    %c0_0 = arith.constant 0 : index
    %1 = vector.load %arg1[%c0, %c0_0] : memref<16x32xbf16, #tpu.memory_space<vmem>>, vector<16x32xbf16>
    %2 = arith.extf %1 : vector<16x32xbf16> to vector<16x32xf32>
    %cst = arith.constant 2.000000e+00 : f32
    %3 = vector.broadcast %cst : f32 to vector<16x32xf32>
    %4 = arith.mulf %2, %3 : vector<16x32xf32>
    %c0_1 = arith.constant 0 : index
    %c0_2 = arith.constant 0 : index
    %5 = vector.load %arg2[%c0_1, %c0_2] : memref<16x32xbf16, #tpu.memory_space<vmem>>, vector<16x32xbf16>
    %6 = arith.extf %5 : vector<16x32xbf16> to vector<16x32xf32>
    %7 = arith.mulf %4, %6 : vector<16x32xf32>
    %cst_3 = arith.constant dense<0.000000e+00> : vector<16xf32>
    %8 = vector.multi_reduction <add>, %7, %cst_3 [1] : vector<16x32xf32> to vector<16xf32>
    %9 = vector.shape_cast %8 : vector<16xf32> to vector<16x1xf32>
    %10 = arith.truncf %4 : vector<16x32xf32> to vector<16x32xbf16>
    %c0_4 = arith.constant 0 : index
    %c0_5 = arith.constant 0 : index
    %11 = vector.load %arg3[%c0_4, %c0_5] : memref<32x16xbf16, #tpu.memory_space<vmem>>, vector<32x16xbf16>
    %cst_6 = arith.constant dense<0.000000e+00> : vector<16x16xf32>
    %12 = tpu.matmul %10, %11, %cst_6 {dimension_numbers = #tpu.dot_dimension_numbers<[1], [0], [0], [1], [0, 0, 1, 1], [], []>} : vector<16x32xbf16>, vector<32x16xbf16>, vector<16x16xf32> -> vector<16x16xf32>
    %13 = tpu.iota {dimensions = array<i32: 1>} : vector<16x16xi32>
    %14 = tpu.iota {dimensions = array<i32: 0>} : vector<16x16xi32>
    %15 = vector.broadcast %0 : i32 to vector<16x16xi32>
    %16 = arith.addi %14, %15 : vector<16x16xi32>
    %17 = arith.cmpi eq, %13, %16 : vector<16x16xi32>
    %cst_7 = arith.constant -1.000000e+30 : f32
    %18 = vector.broadcast %cst_7 : f32 to vector<16x16xf32>
    %19 = arith.select %17, %18, %12 : vector<16x16xi1>, vector<16x16xf32>
    %cst_8 = arith.constant dense<0xFF800000> : vector<16xf32>
    %20 = vector.multi_reduction <maximumf>, %19, %cst_8 [1] : vector<16x16xf32> to vector<16xf32>
    %21 = vector.shape_cast %20 : vector<16xf32> to vector<16x1xf32>
    %22 = vector.broadcast %21 : vector<16x1xf32> to vector<16x16xf32>
    %23 = arith.subf %19, %22 : vector<16x16xf32>
    %24 = math.exp %23 : vector<16x16xf32>
    %cst_9 = arith.constant dense<0.000000e+00> : vector<16xf32>
    %25 = vector.multi_reduction <add>, %24, %cst_9 [1] : vector<16x16xf32> to vector<16xf32>
    %26 = vector.shape_cast %25 : vector<16xf32> to vector<16x1xf32>
    %27 = arith.subf %9, %21 : vector<16x1xf32>
    %28 = math.log %26 : vector<16x1xf32>
    %29 = arith.subf %27, %28 : vector<16x1xf32>
    %cst_10 = arith.constant 0.000000e+00 : f32
    %30 = vector.broadcast %cst_10 : f32 to vector<16x1xf32>
    %31 = arith.subf %30, %29 : vector<16x1xf32>
    %c0_11 = arith.constant 0 : index
    %c0_12 = arith.constant 0 : index
    %32 = vector.load %arg4[%c0_11, %c0_12] : memref<16x1xf32, #tpu.memory_space<vmem>>, vector<16x1xf32>
    tpu.vector_store %arg4[%c0_11, %c0_12], %31 {strides = array<i32>} : memref<16x1xf32, #tpu.memory_space<vmem>>, vector<16x1xf32>,
    return
  }
  func.func @transform_0(%arg0: i32) -> (i32, i32) {
    %c0_i32 = arith.constant 0 : i32
    %c0_i32_0 = arith.constant 0 : i32
    return %arg0, %c0_i32 : i32, i32
  }
  func.func @transform_1(%arg0: i32) -> (i32, i32) {
    %c0_i32 = arith.constant 0 : i32
    %c0_i32_0 = arith.constant 0 : i32
    return %arg0, %c0_i32 : i32, i32
  }
  func.func @transform_2(%arg0: i32) -> (i32, i32) {
    %c0_i32 = arith.constant 0 : i32
    %c0_i32_0 = arith.constant 0 : i32
    %c0_i32_1 = arith.constant 0 : i32
    return %c0_i32, %c0_i32_0 : i32, i32
  }
  func.func @transform_3(%arg0: i32) -> (i32, i32) {
    %c0_i32 = arith.constant 0 : i32
    %c0_i32_0 = arith.constant 0 : i32
    return %arg0, %c0_i32 : i32, i32
  }
}

</mosaic_0001>

<llo_original>
// kernel: tpu_custom_call.1
$region0: #{tpu_custom_call.1}
  #allocation0 [shape = 'u32[]', space=smem, size = 0x4, offset = 0x4, fixed_abs, tag = 'smem constant byte address 0x4 - core index']
  #allocation1 [shape = 'u32[144,128]{1,0:T(1,128)}', space=vmem, size = 0x12000, scoped, tag = 'internal scratch']
  %s0 = inlined_call_operand.vmem [shape: bf16[16,32], index: 0, kind: input, shape index: {}]
  %s1 = inlined_call_operand.vmem [shape: bf16[16,32], index: 1, kind: input, shape index: {}]
  %s2 = inlined_call_operand.vmem [shape: bf16[32,16], index: 2, kind: input, shape index: {}]
  %s3 = inlined_call_operand.vmem [shape: f32[16,1], index: 3, kind: output, shape index: {}]
  %s4 = sld [smem:[#allocation0]]
  $region22: #{tpu_custom_call.1} parent=0
    _
  %s6 = ssub.s32 1, %s4
  %s7 = scalar_select 0, %s6, %s4
  // Predicated region
  $region2: #{tpu_custom_call.1} parent=0 // pred_check
    _
  $region3: #{tpu_custom_call.1} parent=0 // pred_check_branch
    %9 = sbr.rel (0) target = $region5
  $region4: #{tpu_custom_call.1} parent=0 // pred_region
    _
  $region5: #{tpu_custom_call.1} parent=0 // pred_fallthru
    _
  // Predicated region
  $region6: #{tpu_custom_call.1} parent=0 // pred_check
    _
  $region7: #{tpu_custom_call.1} parent=0 // pred_check_branch
    %11 = sbr.rel (0) target = $region9
  $region8: #{tpu_custom_call.1} parent=0 // pred_region
    _
  $region9: #{tpu_custom_call.1} parent=0 // pred_fallthru
    _
  // Predicated region
  $region10: #{tpu_custom_call.1} parent=0 // pred_check
    _
  $region11: #{tpu_custom_call.1} parent=0 // pred_check_branch
    %13 = sbr.rel (0) target = $region13
  $region12: #{tpu_custom_call.1} parent=0 // pred_region
    _
  $region13: #{tpu_custom_call.1} parent=0 // pred_fallthru
    _
  %s15 = smul.u32 0, 16
  %v16 = vld [vmem:[%s0] sm:$0xf]
  %v17 = vld [vmem:[%s0 + $0x4] sm:$0xf]
  %v18 = vunpack.c.l.bf16 %v16
  %v19 = vunpack.c.l.bf16 %v17
  %v20 = vmul.f32 %v18, 2.0
  %v21 = vmul.f32 %v19, 2.0
  %v22 = vld [vmem:[%s1] sm:$0xf]
  %v23 = vld [vmem:[%s1 + $0x4] sm:$0xf]
  %v24 = vunpack.c.l.bf16 %v22
  %v25 = vunpack.c.l.bf16 %v23
  %v26 = vmul.f32 %v20, %v24
  %v27 = vmul.f32 %v21, %v25
  %vm28 = vcmask 261120
  %v29 = vsel %vm28, %v26, 0.0
  %30 = vadd.xlane.f32.xlu0 %v29
  %v31 = vpop.xlane.xlu0 %30
  %v32 = vsel %vm28, %v27, 0.0
  %33 = vadd.xlane.f32.xlu0 %v32
  %v34 = vpop.xlane.xlu0 %33
  %v35 = vpack.c.bf16 %v21, %v20
  %v36 = vld [vmem:[%s2] sm:$0xf]
  %v37 = vld [vmem:[%s2 + $0x4] sm:$0xf]
  %v38 = vld [vmem:[%s2 + $0x8] sm:$0xf]
  %v39 = vld [vmem:[%s2 + $0xc] sm:$0xf]
  %v44 = vunpack.c.l.b16 %v36
  %v45 = vunpack.c.l.b16 %v37
  %v46 = vunpack.c.l.b16 %v38
  %v47 = vunpack.c.l.b16 %v39
  %v48 = vpack.c.b16 %v45, %v44
  %v49 = vpack.c.b16 %v47, %v46
  %v53 = vsel %vm28, %v35, 0
  %55 = vmatprep.subr.bf16.mxu0 0
  %56 = vmatpush1.bf16.msra.mxu0 %v48
  %57 = vmatprep.subr.bf16.mxu0 0
  %58 = vmatpush1.bf16.msra.mxu0 %v49
  %59 = vmatprep.subr.bf16.mxu0 0
  %60 = vmatpush1.bf16.msra.mxu0 0
  %61 = vmatprep.subr.bf16.mxu0 0
  %62 = vmatpush1.bf16.msra.mxu0 0
  %63 = vmatprep.subr.bf16.mxu0 0
  %64 = vmatpush1.bf16.msra.mxu0 0
  %65 = vmatprep.subr.bf16.mxu0 0
  %66 = vmatpush1.bf16.msra.mxu0 0
  %67 = vmatprep.subr.bf16.mxu0 0
  %68 = vmatpush1.bf16.msra.mxu0 0
  %69 = vmatprep.subr.bf16.mxu0 0
  %70 = vmatpush1.bf16.msra.mxu0 0
  %71 = vmatprep.subr.bf16.mxu0 0
  %72 = vmatpush1.bf16.msra.mxu0 0
  %73 = vmatprep.subr.bf16.mxu0 0
  %74 = vmatpush1.bf16.msra.mxu0 0
  %75 = vmatprep.subr.bf16.mxu0 0
  %76 = vmatpush1.bf16.msra.mxu0 0
  %77 = vmatprep.subr.bf16.mxu0 0
  %78 = vmatpush1.bf16.msra.mxu0 0
  %79 = vmatprep.subr.bf16.mxu0 0
  %80 = vmatpush1.bf16.msra.mxu0 0
  %81 = vmatprep.subr.bf16.mxu0 0
  %82 = vmatpush1.bf16.msra.mxu0 0
  %83 = vmatprep.subr.bf16.mxu0 0
  %84 = vmatpush1.bf16.msra.mxu0 0
  %85 = vmatprep.subr.bf16.mxu0 0
  %86 = vmatpush1.bf16.msra.mxu0 0
  %87 = vmatprep.mubr.bf16.mxu0 0
  %88 = vmatmul.mubr.bf16.gmra.mrb[0].mxu0 %v53
  %v89 = vpop.f32.mrb[0].mxu0
  %v90 = vadd.f32 0.0, %v89
  %v91 = vpop.f32.mrb[0].mxu0
  %v92 = vpop.f32.mrb[0].mxu0
  %v93 = vadd.f32 0.0, %v92
  %v94 = vpop.f32.mrb[0].mxu0
  %95 = vdwg.mxu0
  %v96 = vlaneseq
  %v97 = vand.u32 %v96, 127
  %v98 = vlaneseq
  %v99 = vshrl.u32 %v98, 7
  %v100 = vadd.s32 %v99, 8
  %v101 = vstv %s15
  %v102 = vadd.s32 %v99, %v101
  %v103 = vadd.s32 %v100, %v101
  %vm104 = vcmp.eq.s32.totalorder %v97, %v102
  %vm105 = vcmp.eq.s32.totalorder %v97, %v103
  %v106 = vsel %vm104, -1e+30, %v90
  %v107 = vsel %vm105, -1e+30, %v93
  %vm108 = vcmask 130048
  %v109 = vsel %vm108, %v106, -inf
  %110 = vmax.xlane.f32.xlu0 %v109
  %v111 = vpop.xlane.xlu0 %110
  %v112 = vsel %vm108, %v107, -inf
  %113 = vmax.xlane.f32.xlu0 %v112
  %v114 = vpop.xlane.xlu0 %113
  %v115 = vsub.f32 %v106, %v111
  %v116 = vsub.f32 %v107, %v114
  %v117 = vmul.f32 %v115, 1.442695
  %v118 = vpow.pop %v117
  %v119 = vmul.f32 %v116, 1.442695
  %v120 = vpow.pop %v119
  %v121 = vsel %vm108, %v118, 0.0
  %122 = vadd.xlane.f32.xlu0 %v121
  %v123 = vpop.xlane.xlu0 %122
  %v124 = vsel %vm108, %v120, 0.0
  %125 = vadd.xlane.f32.xlu0 %v124
  %v126 = vpop.xlane.xlu0 %125
  %v127 = vsub.f32 %v31, %v111
  %v128 = vsub.f32 %v34, %v114
  %v129 = vlog2.pop %v123
  %v130 = vmul.f32 %v129, 0.6931472
  %v131 = vlog2.pop %v126
  %v132 = vmul.f32 %v131, 0.6931472
  %v133 = vsub.f32 %v127, %v130
  %v134 = vsub.f32 %v128, %v132
  %v135 = vsub.f32 0.0, %v133
  %v136 = vsub.f32 0.0, %v134
  %vm137 = vcmask 7168
  %138 = vst.msk [vmem:[%s3] sm:$0xff] %vm137, %v135
  %139 = vst.msk [vmem:[%s3 + $0x8] sm:$0xff] %vm137, %v136
  // Predicated region
  $region14: #{tpu_custom_call.1} parent=0 // pred_check
    _
  $region15: #{tpu_custom_call.1} parent=0 // pred_check_branch
    %141 = sbr.rel (0) target = $region17
  $region16: #{tpu_custom_call.1} parent=0 // pred_region
    _
  $region17: #{tpu_custom_call.1} parent=0 // pred_fallthru
    _
  // Predicated region
  $region18: #{tpu_custom_call.1} parent=0 // pred_check
    _
  $region19: #{tpu_custom_call.1} parent=0 // pred_check_branch
    %143 = sbr.rel (0) target = $region21
  $region20: #{tpu_custom_call.1} parent=0 // pred_region
    _
  $region21: #{tpu_custom_call.1} parent=0 // pred_fallthru
    _

</llo_original>
